<compile_context>
chip_gen: v7x
topology: tpu7x:2x2x1
jax: 0.10.0
libtpu: 0.0.40
codegen_flags: <defaults>
</compile_context>

<pallas_src>
import jax
import jax.numpy as jnp
from jax.experimental import pallas as pl
from jax.experimental.pallas import tpu as pltpu

# ----------------------------------------------------------------------------- consts
FEATURE_CHANNELS = [256, 512, 1024, 2048]
NUM_MANO_J = 16
NUM_SKELETON_J = 21
NUM_VERTS = 778
V_PAD = 896                               # 7 * 128, lane-dense vertex count
VW3 = 3 * V_PAD                           # fused xyz planes along lanes
WEAK_CAMERA_BASE = {"avg": [1.5, 120.0, 120.0], "std": [0.25, 30.0, 30.0]}

NUM_FLOW_LAYERS = 4
FLOW_HIDDEN = 512
D_FLOW = NUM_MANO_J * 6 + 10 + 3          # 16 joints r6d + 10 shape + 3 weak-cam = 109
D_HALF_A = D_FLOW // 2                    # 54
D_HALF_B = D_FLOW - D_HALF_A              # 55
D_PAD = 64                                # lane padding for flow half-states

MANO_PARENTS = (-1, 0, 1, 2, 0, 4, 5, 0, 7, 8, 0, 10, 11, 0, 13, 14)

HM_DEC = 256                              # heatmap decoder width
HM_OUT_PAD = 32                           # 21 joints padded to 32 output lanes

_ARB = pltpu.CompilerParams(dimension_semantics=("arbitrary",))
_PAR = pltpu.CompilerParams(dimension_semantics=("parallel",))


def _fb(shape):
    """Full-block BlockSpec for grid=(1,)."""
    nd = len(shape)
    return pl.BlockSpec(shape, lambda i: (0,) * nd)


def _row_block(m, target=256, step=16):
    """Largest row block <= target that is a multiple of `step` and divides m."""
    if m <= target:
        return m
    rb = (target // step) * step
    while rb >= step:
        if m % rb == 0:
            return rb
        rb -= step
    return m


# ----------------------------------------------------------------------------- heatmap branch (NHWC, bf16 activations)
def _conv_relu_kernel(x_ref, w_ref, b_ref, o_ref):
    acc = jnp.dot(x_ref[...], w_ref[...], preferred_element_type=jnp.float32)
    o_ref[...] = jnp.maximum(acc + b_ref[...], 0.0).astype(o_ref.dtype)


def _conv_relu_add_kernel(x_ref, w_ref, b_ref, skip_ref, o_ref):
    acc = jnp.dot(x_ref[...], w_ref[...], preferred_element_type=jnp.float32)
    o_ref[...] = (jnp.maximum(acc + b_ref[...], 0.0)
                  + skip_ref[...].astype(jnp.float32)).astype(o_ref.dtype)


def _conv_head_kernel(x_ref, w_ref, b_ref, skip_ref, wout_ref, bout_ref, o_ref):
    acc = jnp.dot(x_ref[...], w_ref[...], preferred_element_type=jnp.float32)
    feat = jnp.maximum(acc + b_ref[...], 0.0) + skip_ref[...].astype(jnp.float32)
    hm = jnp.dot(feat.astype(jnp.bfloat16), wout_ref[...],
                 preferred_element_type=jnp.float32)
    o_ref[...] = hm + bout_ref[...]


def conv_relu(xf, w, b):
    M, K = xf.shape
    N = w.shape[1]
    rb = _row_block(M)
    return pl.pallas_call(
        _conv_relu_kernel,
        out_shape=jax.ShapeDtypeStruct((M, N), jnp.bfloat16),
        grid=(M // rb,),
        in_specs=[pl.BlockSpec((rb, K), lambda i: (i, 0)),
                  pl.BlockSpec((K, N), lambda i: (0, 0)),
                  pl.BlockSpec((1, N), lambda i: (0, 0))],
        out_specs=pl.BlockSpec((rb, N), lambda i: (i, 0)),
        compiler_params=_PAR,
    )(xf, w, b.reshape(1, N))


def conv_relu_add(xf, w, b, skip):
    M, K = xf.shape
    N = w.shape[1]
    rb = _row_block(M)
    return pl.pallas_call(
        _conv_relu_add_kernel,
        out_shape=jax.ShapeDtypeStruct((M, N), jnp.bfloat16),
        grid=(M // rb,),
        in_specs=[pl.BlockSpec((rb, K), lambda i: (i, 0)),
                  pl.BlockSpec((K, N), lambda i: (0, 0)),
                  pl.BlockSpec((1, N), lambda i: (0, 0)),
                  pl.BlockSpec((rb, N), lambda i: (i, 0))],
        out_specs=pl.BlockSpec((rb, N), lambda i: (i, 0)),
        compiler_params=_PAR,
    )(xf, w, b.reshape(1, N), skip)


def conv_head(xf, w, b, skip, wout, bout):
    """Fused conv1x1+ReLU+skip-add followed by the joint head, row-parallel grid."""
    M, K = xf.shape
    N = w.shape[1]
    Nout = wout.shape[1]
    rb = _row_block(M)
    return pl.pallas_call(
        _conv_head_kernel,
        out_shape=jax.ShapeDtypeStruct((M, Nout), jnp.float32),
        grid=(M // rb,),
        in_specs=[
            pl.BlockSpec((rb, K), lambda i: (i, 0)),
            pl.BlockSpec((K, N), lambda i: (0, 0)),
            pl.BlockSpec((1, N), lambda i: (0, 0)),
            pl.BlockSpec((rb, N), lambda i: (i, 0)),
            pl.BlockSpec((N, Nout), lambda i: (0, 0)),
            pl.BlockSpec((1, Nout), lambda i: (0, 0)),
        ],
        out_specs=pl.BlockSpec((rb, Nout), lambda i: (i, 0)),
        compiler_params=_PAR,
    )(xf, w, b.reshape(1, N), skip, wout, bout.reshape(1, Nout))


def heatmap_forward(params, skips):
    # TODO(synk): exact HeatmapPredictor decoder architecture unknown; FPN-style
    # 1x1-conv + nearest-upsample fusion stands in for it.
    B = skips[0].shape[0]

    def nhwc_flat(x):
        Bx, C, H, W = x.shape
        flat = jnp.transpose(x, (0, 2, 3, 1)).reshape(Bx * H * W, C)
        return flat.astype(jnp.bfloat16), (H, W)

    s0f, (H0, W0) = nhwc_flat(skips[0])   # (B*16, 1024)
    s1f, (H1, W1) = nhwc_flat(skips[1])   # (B*64, 512)
    s2f, (H2, W2) = nhwc_flat(skips[2])   # (B*256, 256)

    y0 = conv_relu(s0f, params["hm_W0"], params["hm_b0"])                 # (B*16, 256) bf16
    up0 = y0.reshape(B, H0, W0, HM_DEC)
    up0 = jnp.repeat(jnp.repeat(up0, 2, axis=1), 2, axis=2).reshape(B * H1 * W1, HM_DEC)

    y1 = conv_relu_add(s1f, params["hm_W1"], params["hm_b1"], up0)        # (B*64, 256) bf16
    up1 = y1.reshape(B, H1, W1, HM_DEC)
    up1 = jnp.repeat(jnp.repeat(up1, 2, axis=1), 2, axis=2).reshape(B * H2 * W2, HM_DEC)

    hm_pad = conv_head(s2f, params["hm_W2"], params["hm_b2"], up1,
                       params["hm_Wout"], params["hm_bout"])              # (B*256, 32) f32
    heatmaps = jnp.transpose(
        hm_pad[:, :NUM_SKELETON_J].reshape(B, H2, W2, NUM_SKELETON_J), (0, 3, 1, 2))
    return heatmaps  # [B, 21, H, W]


# ----------------------------------------------------------------------------- peak extraction
def _peaks_kernel(hm_ref, val_ref, idx_ref):
    x = hm_ref[...]
    L = x.shape[-1]
    m = jnp.max(x, axis=-1, keepdims=True)
    ii = jax.lax.broadcasted_iota(jnp.int32, x.shape, 1)
    # first-occurrence argmax (matches torch.argmax convention); clamp for NaN rows
    idx = jnp.min(jnp.where(x >= m, ii, L), axis=-1, keepdims=True)
    idx = jnp.minimum(idx, L - 1)
    val_ref[...] = m
    idx_ref[...] = idx


def pallas_peaks(flat):
    R, L = flat.shape
    return pl.pallas_call(
        _peaks_kernel,
        out_shape=(
            jax.ShapeDtypeStruct((R, 1), jnp.float32),
            jax.ShapeDtypeStruct((R, 1), jnp.int32),
        ),
        grid=(1,),
        in_specs=[_fb((R, L))],
        out_specs=(_fb((R, 1)), _fb((R, 1))),
        compiler_params=_ARB,
    )(flat.astype(jnp.float32))


def get_peaks_uv(heatmaps):
    B, J, H, W = heatmaps.shape
    flat = heatmaps.reshape(B * J, H * W)
    vals, idx = pallas_peaks(flat)
    vals, idx = vals[:, 0], idx[:, 0]
    row = (idx // W).astype(jnp.float32)
    col = (idx % W).astype(jnp.float32)
    u = (col + 0.5) / W
    v = (row + 0.5) / H
    uvs = jnp.stack([u, v], axis=-1).reshape(B, J, 2)
    cfd = jax.nn.sigmoid(vals).reshape(B, J)  # TODO(synk): peak value -> confidence stand-in
    return uvs, cfd


# ----------------------------------------------------------------------------- context embedding (run once per image)
def _ctx_embed_kernel(ctx_ref, w_ref, b_ref, o_ref):
    emb = jnp.dot(ctx_ref[...].astype(jnp.bfloat16), w_ref[...],
                  preferred_element_type=jnp.float32)
    o_ref[...] = jnp.maximum(emb + b_ref[...], 0.0).astype(jnp.bfloat16)


def ctx_embed(params, context):
    B, C = context.shape
    H = FLOW_HIDDEN
    return pl.pallas_call(
        _ctx_embed_kernel,
        out_shape=jax.ShapeDtypeStruct((B, H), jnp.bfloat16),
        grid=(1,),
        in_specs=[_fb((B, C)), _fb((C, H)), _fb((1, H))],
        out_specs=_fb((B, H)),
        compiler_params=_ARB,
    )(context, params["fl_Wctx"], params["fl_bctx"])


# ----------------------------------------------------------------------------- fused conditional flow
def _flow_kernel(za_ref, zb_ref, ctx_ref,
                 w1c_ref, w1h_ref, b1_ref, w2_ref, b2_ref, w3_ref, b3_ref,
                 xa_out, xb_out, ld_out):
    ctx_bf = ctx_ref[...]                       # (rows, H) bf16, precomputed embedding
    xa = za_ref[...]                            # first 54 lanes valid, rest 0
    xb = zb_ref[...]                            # first 55 lanes valid, rest 0
    rows = xa.shape[0]
    ld = jnp.zeros((rows, 1), jnp.float32)
    lane = jax.lax.broadcasted_iota(jnp.int32, (1, D_PAD), 1)

    for l in range(NUM_FLOW_LAYERS):
        xc, xt = (xa, xb) if l % 2 == 0 else (xb, xa)
        d_t = D_HALF_B if l % 2 == 0 else D_HALF_A
        tmask = (lane < d_t).astype(jnp.float32)

        h = jnp.dot(xc.astype(jnp.bfloat16), w1c_ref[l],
                    preferred_element_type=jnp.float32)
        h = h + jnp.dot(ctx_bf, w1h_ref[l], preferred_element_type=jnp.float32)
        h = jnp.maximum(h + b1_ref[l], 0.0)
        h = jnp.maximum(
            jnp.dot(h.astype(jnp.bfloat16), w2_ref[l],
                    preferred_element_type=jnp.float32) + b2_ref[l], 0.0)
        # merged head: [shift || logs] in one lane-dense 128-wide matmul
        sl = jnp.dot(h.astype(jnp.bfloat16), w3_ref[l],
                     preferred_element_type=jnp.float32) + b3_ref[l]
        shift = sl[:, :D_PAD] * tmask
        logs = jnp.tanh(sl[:, D_PAD:]) * tmask
        yt = xt * jnp.exp(logs) + shift
        ld = ld + jnp.sum(logs, axis=-1, keepdims=True)
        if l % 2 == 0:
            xb = yt
        else:
            xa = yt

    xa_out[...] = xa
    xb_out[...] = xb
    ld_out[...] = ld


def r6d_to_rmt(r6d):
    a1, a2 = r6d[..., 0:3], r6d[..., 3:6]
    b1 = a1 / (jnp.linalg.norm(a1, axis=-1, keepdims=True) + 1e-8)
    a2p = a2 - jnp.sum(b1 * a2, axis=-1, keepdims=True) * b1
    b2 = a2p / (jnp.linalg.norm(a2p, axis=-1, keepdims=True) + 1e-8)
    b3 = jnp.cross(b1, b2)
    return jnp.stack([b1, b2, b3], axis=-1)  # [..., 3, 3]


def flow_generate(params, ctx_emb, num_samples, key):
    B = ctx_emb.shape[0]
    BN = B * num_samples
    H = FLOW_HIDDEN
    L = NUM_FLOW_LAYERS

    z = jax.random.normal(key, (BN, D_FLOW), dtype=jnp.float32)
    base_logp = -0.5 * jnp.sum(z * z, axis=-1) - 0.5 * D_FLOW * jnp.log(2.0 * jnp.pi)

    za = jnp.zeros((BN, D_PAD), jnp.float32).at[:, :D_HALF_A].set(z[:, :D_HALF_A])
    zb = jnp.zeros((BN, D_PAD), jnp.float32).at[:, :D_HALF_B].set(z[:, D_HALF_A:])
    ctx_rep = jnp.repeat(ctx_emb, num_samples, axis=0)       # (BN, 512) bf16

    rb = _row_block(BN, target=256, step=16)

    xa, xb, ld = pl.pallas_call(
        _flow_kernel,
        out_shape=(
            jax.ShapeDtypeStruct((BN, D_PAD), jnp.float32),
            jax.ShapeDtypeStruct((BN, D_PAD), jnp.float32),
            jax.ShapeDtypeStruct((BN, 1), jnp.float32),
        ),
        grid=(BN // rb,),
        in_specs=[
            pl.BlockSpec((rb, D_PAD), lambda i: (i, 0)),
            pl.BlockSpec((rb, D_PAD), lambda i: (i, 0)),
            pl.BlockSpec((rb, H), lambda i: (i, 0)),
            pl.BlockSpec((L, D_PAD, H), lambda i: (0, 0, 0)),
            pl.BlockSpec((L, H, H), lambda i: (0, 0, 0)),
            pl.BlockSpec((L, 1, H), lambda i: (0, 0, 0)),
            pl.BlockSpec((L, H, H), lambda i: (0, 0, 0)),
            pl.BlockSpec((L, 1, H), lambda i: (0, 0, 0)),
            pl.BlockSpec((L, H, 2 * D_PAD), lambda i: (0, 0, 0)),
            pl.BlockSpec((L, 1, 2 * D_PAD), lambda i: (0, 0, 0)),
        ],
        out_specs=(
            pl.BlockSpec((rb, D_PAD), lambda i: (i, 0)),
            pl.BlockSpec((rb, D_PAD), lambda i: (i, 0)),
            pl.BlockSpec((rb, 1), lambda i: (i, 0)),
        ),
        compiler_params=pltpu.CompilerParams(
            dimension_semantics=("parallel",),
            vmem_limit_bytes=32 * 1024 * 1024),
    )(za, zb, ctx_rep,
      params["fl_W1c"], params["fl_W1h"], params["fl_b1"],
      params["fl_W2"], params["fl_b2"],
      params["fl_W3"], params["fl_b3"])

    logdet = ld[:, 0]
    x = jnp.concatenate([xa[:, :D_HALF_A], xb[:, :D_HALF_B]], axis=-1)   # (BN, 109)

    sampled_logp = (base_logp - logdet).reshape(B, num_samples)
    r6d = x[:, : NUM_MANO_J * 6].reshape(BN, NUM_MANO_J, 6)
    shape = x[:, NUM_MANO_J * 6: NUM_MANO_J * 6 + 10]
    cam_raw = x[:, NUM_MANO_J * 6 + 10:]
    rmt = r6d_to_rmt(r6d)
    cam = (jnp.asarray(WEAK_CAMERA_BASE["avg"], jnp.float32)
           + jnp.asarray(WEAK_CAMERA_BASE["std"], jnp.float32) * cam_raw)
    return rmt, r6d, shape, cam, sampled_logp


# ----------------------------------------------------------------------------- MANO layer (two fused kernels, fused xyz planes)
def _mano_blend_kernel(beta_ref, pose_ref, vtpl_ref, shp_ref, psd_ref, jreg_ref,
                       vp_out, j_out):
    beta_bf = beta_ref[...].astype(jnp.bfloat16)
    pose_bf = pose_ref[...].astype(jnp.bfloat16)
    vs = vtpl_ref[...] + jnp.dot(beta_bf, shp_ref[...],
                                 preferred_element_type=jnp.float32)      # (BN, VW3)
    vp = vs + jnp.dot(pose_bf, psd_ref[...], preferred_element_type=jnp.float32)
    vp_out[...] = vp
    # rest-pose joints via block-diagonal regressor -> [x16 | y16 | z16]
    j_out[...] = jnp.dot(vs, jreg_ref[...], preferred_element_type=jnp.float32)


def _mano_lbs_kernel(vp_ref, a_ref, lbswT_ref, j21_ref, cam_ref, v_out, j_out):
    bn = vp_ref.shape[0]
    # one MXU pass for all 12 (i,k) transform components: (12*BN,16)@(16,V_PAD)
    T = jnp.dot(a_ref[...], lbswT_ref[...], preferred_element_type=jnp.float32)
    planes = []
    for i in range(3):
        acc = T[(i * 4 + 3) * bn:(i * 4 + 4) * bn, :]            # translation
        for k in range(3):
            acc = acc + (T[(i * 4 + k) * bn:(i * 4 + k + 1) * bn, :]
                         * vp_ref[:, k * V_PAD:(k + 1) * V_PAD])
        planes.append(acc)
    v_all = jnp.concatenate(planes, axis=-1)                     # (BN, VW3)
    v_out[...] = v_all

    # 21-joint regression via block-diag regressor -> [x21 | y21 | z21 | pad]
    jreg = jnp.dot(v_all, j21_ref[...], preferred_element_type=jnp.float32)   # (BN, 64)
    scale = cam_ref[:, 0:1] * 1000.0
    lane = jax.lax.broadcasted_iota(jnp.int32, (1, 64), 1)
    trans = jnp.where(lane < NUM_SKELETON_J, cam_ref[:, 1:2],
                      jnp.where(lane < 2 * NUM_SKELETON_J, cam_ref[:, 2:3], 0.0))
    j2d_slab = jreg * scale + trans                              # cols 0..41 = x2d|y2d
    j_out[...] = jnp.concatenate([jreg, j2d_slab], axis=-1)      # (BN, 128) lane-dense


def _rigid(R, t):
    BN = R.shape[0]
    top = jnp.concatenate([R, t[:, :, None]], axis=-1)  # [BN,3,4]
    bot = jnp.broadcast_to(jnp.array([[[0.0, 0.0, 0.0, 1.0]]], jnp.float32), (BN, 1, 4))
    return jnp.concatenate([top, bot], axis=1)          # [BN,4,4]


def mano_forward(params, root_rmt, finger_rmt, beta, cam):
    # TODO(synk): exact RotMatrixManolayer internals unknown; synthetic LBS MANO.
    BN = beta.shape[0]
    R = jnp.concatenate([root_rmt, finger_rmt], axis=1)   # (BN,16,3,3)
    eye = jnp.eye(3, dtype=jnp.float32)
    pose_feat = (finger_rmt - eye).reshape(BN, 15 * 9)

    # kernel M1: blend shapes + rest-pose joint regression (fused xyz planes)
    vp_all, j_flat = pl.pallas_call(
        _mano_blend_kernel,
        out_shape=(
            jax.ShapeDtypeStruct((BN, VW3), jnp.float32),
            jax.ShapeDtypeStruct((BN, 3 * NUM_MANO_J), jnp.float32),
        ),
        grid=(1,),
        in_specs=[
            _fb((BN, 10)), _fb((BN, 135)), _fb((1, VW3)),
            _fb((10, VW3)), _fb((135, VW3)), _fb((VW3, 3 * NUM_MANO_J)),
        ],
        out_specs=(_fb((BN, VW3)), _fb((BN, 3 * NUM_MANO_J))),
        compiler_params=_ARB,
    )(beta, pose_feat, params["mano_v_template"], params["mano_shapedirs"],
      params["mano_posedirs"], params["mano_Jreg_blk"])

    J = jnp.transpose(j_flat.reshape(BN, 3, NUM_MANO_J), (0, 2, 1))   # (BN,16,3)

    # forward kinematics: tiny 4x4 chain, plain JAX glue
    rel = [J[:, 0]]
    for j in range(1, NUM_MANO_J):
        rel.append(J[:, j] - J[:, MANO_PARENTS[j]])
    G = [None] * NUM_MANO_J
    G[0] = _rigid(R[:, 0], rel[0])
    for j in range(1, NUM_MANO_J):
        G[j] = jnp.einsum("bij,bjk->bik", G[MANO_PARENTS[j]], _rigid(R[:, j], rel[j]))
    G = jnp.stack(G, axis=1)             # (BN,16,4,4)

    Jh = jnp.concatenate([J, jnp.zeros((BN, NUM_MANO_J, 1), jnp.float32)], axis=-1)
    corr = jnp.einsum("bjik,bjk->bji", G, Jh)
    A = G.at[..., :, 3].add(-corr)       # remove rest-pose translation

    # stack so row index = (i*4 + k)*BN + b -> single LBS matmul in the kernel
    A_stack = jnp.transpose(A[:, :, :3, :], (2, 3, 0, 1)).reshape(12 * BN, NUM_MANO_J)

    # kernel M2: LBS + skinning + j21 regression + weak-cam projection
    v_all, j_slab = pl.pallas_call(
        _mano_lbs_kernel,
        out_shape=(
            jax.ShapeDtypeStruct((BN, VW3), jnp.float32),
            jax.ShapeDtypeStruct((BN, 128), jnp.float32),
        ),
        grid=(1,),
        in_specs=[
            _fb((BN, VW3)), _fb((12 * BN, NUM_MANO_J)),
            _fb((NUM_MANO_J, V_PAD)), _fb((VW3, 64)), _fb((BN, 3)),
        ],
        out_specs=(_fb((BN, VW3)), _fb((BN, 128))),
        compiler_params=_ARB,
    )(vp_all, A_stack, params["mano_lbs_wT"], params["mano_J21reg_blk"], cam)

    verts = jnp.stack(
        [v_all[:, c * V_PAD: c * V_PAD + NUM_VERTS] for c in range(3)], axis=-1)
    j21 = jnp.transpose(
        j_slab[:, : 3 * NUM_SKELETON_J].reshape(BN, 3, NUM_SKELETON_J), (0, 2, 1))
    j2d = jnp.stack(
        [j_slab[:, 64: 64 + NUM_SKELETON_J],
         j_slab[:, 64 + NUM_SKELETON_J: 64 + 2 * NUM_SKELETON_J]], axis=-1)
    return verts, j21, j2d


# ----------------------------------------------------------------------------- params
def init_params(key):
    ks = iter(jax.random.split(key, 64))
    bf = jnp.bfloat16

    def nrm(shape, scale=0.02, dtype=jnp.float32):
        return (jax.random.normal(next(ks), shape, dtype=jnp.float32) * scale).astype(dtype)

    p = {}

    # heatmap decoder (1x1 conv projections + padded output head), bf16 weights
    skip_dims = FEATURE_CHANNELS[::-1][1:]    # [1024, 512, 256]
    for i, c in enumerate(skip_dims):
        p[f"hm_W{i}"] = nrm((c, HM_DEC), dtype=bf)
        p[f"hm_b{i}"] = jnp.zeros((HM_DEC,), jnp.float32)
    wout = jnp.zeros((HM_DEC, HM_OUT_PAD), jnp.float32)
    wout = wout.at[:, :NUM_SKELETON_J].set(
        jax.random.normal(next(ks), (HM_DEC, NUM_SKELETON_J), dtype=jnp.float32) * 0.02)
    p["hm_Wout"] = wout.astype(bf)
    p["hm_bout"] = jnp.zeros((HM_OUT_PAD,), jnp.float32)

    # conditional coupling flow (ctx embedding hoisted, merged shift/logs head)
    ctx_dim, hid = FEATURE_CHANNELS[-1], FLOW_HIDDEN
    p["fl_Wctx"] = nrm((ctx_dim, hid), dtype=bf)
    p["fl_bctx"] = jnp.zeros((1, hid), jnp.float32)

    w1c, w1h, b1, w2, b2, w3, b3 = [], [], [], [], [], [], []
    lane = jnp.arange(D_PAD)
    for l in range(NUM_FLOW_LAYERS):
        d_cond = D_HALF_A if l % 2 == 0 else D_HALF_B
        d_t = D_FLOW - d_cond
        cmask = (lane < d_cond).astype(jnp.float32)
        tmask = (lane < d_t).astype(jnp.float32)
        w1c.append(nrm((D_PAD, hid)) * cmask[:, None])
        w1h.append(nrm((hid, hid)))
        b1.append(jnp.zeros((1, hid), jnp.float32))
        w2.append(nrm((hid, hid)))
        b2.append(jnp.zeros((1, hid), jnp.float32))
        w3s = nrm((hid, D_PAD), 0.01) * tmask[None, :]
        w3l = nrm((hid, D_PAD), 0.01) * tmask[None, :]
        w3.append(jnp.concatenate([w3s, w3l], axis=-1))        # (hid, 128)
        b3.append(jnp.zeros((1, 2 * D_PAD), jnp.float32))
    p["fl_W1c"] = jnp.stack(w1c).astype(bf)
    p["fl_W1h"] = jnp.stack(w1h).astype(bf)
    p["fl_b1"] = jnp.stack(b1)
    p["fl_W2"] = jnp.stack(w2).astype(bf)
    p["fl_b2"] = jnp.stack(b2)
    p["fl_W3"] = jnp.stack(w3).astype(bf)
    p["fl_b3"] = jnp.stack(b3)

    # synthetic MANO model parameters, fused xyz-plane layout with V padded to 896
    V = NUM_VERTS

    def planes(x_kv3):        # (K, V, 3) -> (K, 3*V_PAD) with zero vertex padding
        xp = jnp.transpose(x_kv3, (0, 2, 1))                       # (K, 3, V)
        xp = jnp.pad(xp, ((0, 0), (0, 0), (0, V_PAD - V)))
        return xp.reshape(x_kv3.shape[0], VW3)

    v_tpl = nrm((V, 3), 0.01)
    p["mano_v_template"] = planes(v_tpl[None])                              # (1, VW3) f32
    p["mano_shapedirs"] = planes(nrm((10, V, 3), 1e-3)).astype(bf)          # (10, VW3)
    p["mano_posedirs"] = planes(nrm((135, V, 3), 1e-4)).astype(bf)          # (135, VW3)

    J_reg = jax.nn.softmax(nrm((NUM_MANO_J, V), 1.0), axis=-1)
    JregT = jnp.transpose(J_reg, (1, 0))                                    # (V, 16)
    jreg_blk = jnp.zeros((VW3, 3 * NUM_MANO_J), jnp.float32)
    for c in range(3):
        jreg_blk = jreg_blk.at[c * V_PAD: c * V_PAD + V,
                               c * NUM_MANO_J:(c + 1) * NUM_MANO_J].set(JregT)
    p["mano_Jreg_blk"] = jreg_blk                                           # (VW3, 48)

    J21_reg = jax.nn.softmax(nrm((NUM_SKELETON_J, V), 1.0), axis=-1)
    J21regT = jnp.transpose(J21_reg, (1, 0))                                # (V, 21)
    j21_blk = jnp.zeros((VW3, 64), jnp.float32)
    for c in range(3):
        j21_blk = j21_blk.at[c * V_PAD: c * V_PAD + V,
                             c * NUM_SKELETON_J:(c + 1) * NUM_SKELETON_J].set(J21regT)
    p["mano_J21reg_blk"] = j21_blk                                          # (VW3, 64)

    lbs_w = jax.nn.softmax(nrm((V, NUM_MANO_J), 1.0), axis=-1)
    p["mano_lbs_wT"] = jnp.pad(jnp.transpose(lbs_w, (1, 0)),
                               ((0, 0), (0, V_PAD - V)))                    # (16, V_PAD)
    return p


# ----------------------------------------------------------------------------- full forward
def ambhand_stage1_forward(params, image_features, batch_data, num_samples, key):
    # context = last feature map, global-average-pooled (plain XLA: tiny reduction)
    context = jnp.mean(image_features[-1].astype(jnp.float32), axis=(-1, -2))  # (B, 2048)
    B, N = context.shape[0], num_samples
    img_resolution = batch_data["image"].shape[-1]

    # heatmap branch
    skips = image_features[::-1][1:]
    heatmaps = heatmap_forward(params, skips)
    hm_uvs, hm_cfd = get_peaks_uv(heatmaps)

    # flow branch: embed context once, then sample N hypotheses per image
    emb = ctx_embed(params, context)                                        # (B, 512) bf16
    pred_rmt, pred_r6d, pred_shape, pred_weakcam, sampled_logp = flow_generate(
        params, emb, N, key)

    # TODO(synk): training branch (flow log-prob of GT multi-hypothesis rmt via the
    # inverse flow) requires GT annotations; eval path only -> zeros like PyTorch.
    pred_logp = jnp.zeros((B, N), jnp.float32)

    BN = B * N
    _amb_rmt = pred_rmt.reshape(BN, 16, 3, 3)
    _amb_cam = pred_weakcam.reshape(BN, 3)
    _amb_shape = pred_shape.reshape(BN, 10)

    pred_amb_v3d, pred_amb_j3d, pred_amb_j2d = mano_forward(
        params, _amb_rmt[:, :1], _amb_rmt[:, 1:], _amb_shape, _amb_cam)

    pred_logp = pred_logp.reshape(B, -1)
    pred_shape = pred_shape.reshape(B, N, 10)
    pred_weakcam = pred_weakcam.reshape(B, N, 3)
    pred_rmt = pred_rmt.reshape(B, N, 16, 3, 3)
    pred_r6d = pred_r6d.reshape(B, N, 16, 6)
    pred_amb_v3d = pred_amb_v3d.reshape(B, N, NUM_VERTS, 3)
    pred_amb_j3d = pred_amb_j3d.reshape(B, N, NUM_SKELETON_J, 3)
    pred_amb_j2d = pred_amb_j2d.reshape(B, N, NUM_SKELETON_J, 2)
    hm_j2d = (hm_uvs * img_resolution).reshape(B, NUM_SKELETON_J, 2)
    hm_cfd = hm_cfd.reshape(B, NUM_SKELETON_J)

    preds = dict(
        log_p=pred_logp,
        log_p_sampled=sampled_logp,
        amb_shape=pred_shape,
        amb_weakcam=pred_weakcam,
        amb_rmt=pred_rmt,
        amb_r6d=pred_r6d,
        amb_v3d=pred_amb_v3d,
        amb_j3d=pred_amb_j3d,
        amb_j2d=pred_amb_j2d,
        z0_shape=pred_shape[:, 0],
        z0_weakcam=pred_weakcam[:, 0],
        z0_rmt=pred_rmt[:, 0],
        z0_r6d=pred_r6d[:, 0],
        z0_v3d=pred_amb_v3d[:, 0],
        z0_j3d=pred_amb_j3d[:, 0],
        z0_j2d=pred_amb_j2d[:, 0],
        heatmap=heatmaps,
        hm_j2d=hm_j2d,
        hm_cfd=hm_cfd,
    )
    return preds


# ----------------------------------------------------------------------------- main
if __name__ == "__main__":
    root_key = jax.random.PRNGKey(0)
    k_param, k_img, k_f0, k_f1, k_f2, k_f3, k_sample = jax.random.split(root_key, 7)

    B = 2
    NUM_SAMPLES = 4
    IMG = 64

    params = init_params(k_param)

    image = jax.random.normal(k_img, (B, 3, IMG, IMG), dtype=jnp.float32)
    image_features = [
        jax.random.normal(k_f0, (B, 256, 16, 16), dtype=jnp.float32),
        jax.random.normal(k_f1, (B, 512, 8, 8), dtype=jnp.float32),
        jax.random.normal(k_f2, (B, 1024, 4, 4), dtype=jnp.float32),
        jax.random.normal(k_f3, (B, 2048, 2, 2), dtype=jnp.float32),
    ]
    batch_data = {"image": image}

    preds = ambhand_stage1_forward(params, image_features, batch_data, NUM_SAMPLES, k_sample)
    jax.block_until_ready(preds)

    # light sanity checks on shapes
    assert preds["amb_rmt"].shape == (B, NUM_SAMPLES, 16, 3, 3)
    assert preds["amb_v3d"].shape == (B, NUM_SAMPLES, 778, 3)
    assert preds["amb_j3d"].shape == (B, NUM_SAMPLES, 21, 3)
    assert preds["amb_j2d"].shape == (B, NUM_SAMPLES, 21, 2)
    assert preds["heatmap"].shape == (B, 21, 16, 16)
    assert preds["hm_j2d"].shape == (B, 21, 2)
    assert preds["log_p_sampled"].shape == (B, NUM_SAMPLES)

    print("KERNEL_OK")
</pallas_src>

<mosaic_0001>
module attributes {stable_mosaic.version = 11 : i64} {
  func.func @_conv_relu_kernel(%arg0: i32, %arg1: memref<32x1024xbf16, #tpu.memory_space<vmem>>, %arg2: memref<1024x256xbf16, #tpu.memory_space<vmem>>, %arg3: memref<1x256xf32, #tpu.memory_space<vmem>>, %arg4: memref<32x256xbf16, #tpu.memory_space<vmem>>) attributes {dimension_semantics = [#tpu.dimension_semantics<parallel>], iteration_bounds = array<i64: 1>, scalar_prefetch = 0 : i64, scratch_operands = 0 : i64, tpu.core_type = #tpu.core_type<tc>, window_params = [{transform_indices = @transform_0, window_bounds = array<i64: 32, 1024>}, {pipeline_mode = #tpu.pipeline_mode<synchronous>, transform_indices = @transform_1, window_bounds = array<i64: 1024, 256>}, {pipeline_mode = #tpu.pipeline_mode<synchronous>, transform_indices = @transform_2, window_bounds = array<i64: 1, 256>}, {transform_indices = @transform_3, window_bounds = array<i64: 32, 256>}]} {
    %c0 = arith.constant 0 : index
    %c0_0 = arith.constant 0 : index
    %0 = vector.load %arg1[%c0, %c0_0] : memref<32x1024xbf16, #tpu.memory_space<vmem>>, vector<32x1024xbf16>
    %c0_1 = arith.constant 0 : index
    %c0_2 = arith.constant 0 : index
    %1 = vector.load %arg2[%c0_1, %c0_2] : memref<1024x256xbf16, #tpu.memory_space<vmem>>, vector<1024x256xbf16>
    %cst = arith.constant dense<0.000000e+00> : vector<32x256xf32>
    %2 = tpu.matmul %0, %1, %cst {dimension_numbers = #tpu.dot_dimension_numbers<[1], [0], [0], [1], [0, 0, 1, 1], [], []>} : vector<32x1024xbf16>, vector<1024x256xbf16>, vector<32x256xf32> -> vector<32x256xf32>
    %c0_3 = arith.constant 0 : index
    %c0_4 = arith.constant 0 : index
    %3 = vector.load %arg3[%c0_3, %c0_4] : memref<1x256xf32, #tpu.memory_space<vmem>>, vector<1x256xf32>
    %4 = vector.broadcast %3 : vector<1x256xf32> to vector<32x256xf32>
    %5 = arith.addf %2, %4 : vector<32x256xf32>
    %cst_5 = arith.constant 0.000000e+00 : f32
    %6 = vector.broadcast %cst_5 : f32 to vector<32x256xf32>
    %7 = arith.maximumf %5, %6 : vector<32x256xf32>
    %8 = arith.truncf %7 : vector<32x256xf32> to vector<32x256xbf16>
    %c0_6 = arith.constant 0 : index
    %c0_7 = arith.constant 0 : index
    %9 = vector.load %arg4[%c0_6, %c0_7] : memref<32x256xbf16, #tpu.memory_space<vmem>>, vector<32x256xbf16>
    tpu.vector_store %arg4[%c0_6, %c0_7], %8 {strides = array<i32>} : memref<32x256xbf16, #tpu.memory_space<vmem>>, vector<32x256xbf16>,
    return
  }
  func.func @transform_0(%arg0: i32) -> (i32, i32) {
    %c0_i32 = arith.constant 0 : i32
    %c0_i32_0 = arith.constant 0 : i32
    return %arg0, %c0_i32 : i32, i32
  }
  func.func @transform_1(%arg0: i32) -> (i32, i32) {
    %c0_i32 = arith.constant 0 : i32
    %c0_i32_0 = arith.constant 0 : i32
    %c0_i32_1 = arith.constant 0 : i32
    return %c0_i32, %c0_i32_0 : i32, i32
  }
  func.func @transform_2(%arg0: i32) -> (i32, i32) {
    %c0_i32 = arith.constant 0 : i32
    %c0_i32_0 = arith.constant 0 : i32
    %c0_i32_1 = arith.constant 0 : i32
    return %c0_i32, %c0_i32_0 : i32, i32
  }
  func.func @transform_3(%arg0: i32) -> (i32, i32) {
    %c0_i32 = arith.constant 0 : i32
    %c0_i32_0 = arith.constant 0 : i32
    return %arg0, %c0_i32 : i32, i32
  }
}

</mosaic_0001>

<llo_original>
// kernel: tpu_custom_call.1
$region0: #{tpu_custom_call.1}
  #allocation0 [shape = 'u32[]', space=smem, size = 0x4, offset = 0x4, fixed_abs, tag = 'smem constant byte address 0x4 - core index']
  #allocation1 [shape = 'u32[144,128]{1,0:T(1,128)}', space=vmem, size = 0x12000, scoped, tag = 'internal scratch']
  %s0 = inlined_call_operand.hbm [shape: bf16[32,1024], index: 0, kind: input, shape index: {}]
  %s1 = inlined_call_operand.hbm [shape: bf16[1024,256], index: 1, kind: input, shape index: {}]
  %s2 = inlined_call_operand.vmem [shape: f32[1,256], index: 2, kind: input, shape index: {}]
  %s3 = inlined_call_operand.hbm [shape: bf16[32,256], index: 3, kind: output, shape index: {}]
  %s4 = sld [smem:[#allocation0]]
  $region30: #{tpu_custom_call.1} parent=0
    _
  %s6 = ssub.s32 1, %s4
  %s7 = scalar_select 0, %s6, %s4
  $region1: #{tpu_custom_call.1} parent=0
    #allocation2 [shape = 'u8[65536]{0}', space=vmem, size = 0x10000, scoped, tag = 'input window, operand 0, single buffered']
    #allocation3 [shape = 's32[1]{0}', space=sflag, size = 0x4, scoped, tag = 'scoped memory for tpu_custom_call.1']
    #allocation4 [shape = 's32[1]{0}', space=sflag, size = 0x4, scoped, tag = 'scoped memory for tpu_custom_call.1']
    #allocation5 [shape = 'u8[524288]{0}', space=vmem, size = 0x80000, scoped, tag = 'input window, operand 1, single buffered']
    #allocation6 [shape = 's32[1]{0}', space=sflag, size = 0x4, scoped, tag = 'scoped memory for tpu_custom_call.1']
    #allocation7 [shape = 'u8[16384]{0}', space=vmem, size = 0x4000, scoped, tag = 'output window, operand 0, single buffered']
    %8 = vsyncpa [#allocation3], 0
    %9 = vsyncpa [#allocation6], 0
    %10 = vsyncpa [#allocation4], 0
    // Predicated region
    $region2: #{tpu_custom_call.1} parent=1 // pred_check
      _
    $region3: #{tpu_custom_call.1} parent=1 // pred_check_branch
      %12 = sbr.rel (0) target = $region5
    $region4: #{tpu_custom_call.1} parent=1 // pred_region
      %s14 = ssub.s32 2048, 2048
      %15 = vsyncadd [#allocation3], %s14
      %s16 = sshll.u32 [#allocation2], 4
      %s17 = int_to_ptr.vmem [resolvable:$true] %s16
      %22 = dma.hbm_to_vmem [thread:$0]  %s0, 2048, %s17, [#allocation3], 512, 512, 32
    $region5: #{tpu_custom_call.1} parent=1 // pred_fallthru
      _
    // Predicated region
    $region6: #{tpu_custom_call.1} parent=1 // pred_check
      _
    $region7: #{tpu_custom_call.1} parent=1 // pred_check_branch
      %24 = sbr.rel (0) target = $region9
    $region8: #{tpu_custom_call.1} parent=1 // pred_region
      %s26 = ssub.s32 16384, 16384
      %27 = vsyncadd [#allocation6], %s26
      %s28 = sshll.u32 [#allocation5], 4
      %s29 = int_to_ptr.vmem [resolvable:$true] %s28
      %34 = dma.hbm_to_vmem [thread:$0]  %s1, 16384, %s29, [#allocation6], 128, 128, 8
    $region9: #{tpu_custom_call.1} parent=1 // pred_fallthru
      _
    // Predicated region
    $region10: #{tpu_custom_call.1} parent=1 // pred_check
      _
    $region11: #{tpu_custom_call.1} parent=1 // pred_check_branch
      %36 = sbr.rel (0) target = $region13
    $region12: #{tpu_custom_call.1} parent=1 // pred_region
      _
    $region13: #{tpu_custom_call.1} parent=1 // pred_fallthru
      _
    // Predicated region
    $region14: #{tpu_custom_call.1} parent=1 // pred_check
      _
    $region15: #{tpu_custom_call.1} parent=1 // pred_check_branch
      %38 = sbr.rel (0) target = $region17
    $region16: #{tpu_custom_call.1} parent=1 // pred_region
      %39 = dma.done [#allocation3], 2048
    $region17: #{tpu_custom_call.1} parent=1 // pred_fallthru
      _
    // Predicated region
    $region18: #{tpu_custom_call.1} parent=1 // pred_check
      _
    $region19: #{tpu_custom_call.1} parent=1 // pred_check_branch
      %41 = sbr.rel (0) target = $region21
    $region20: #{tpu_custom_call.1} parent=1 // pred_region
      %42 = dma.done [#allocation6], 16384
    $region21: #{tpu_custom_call.1} parent=1 // pred_fallthru
      _
    %v43 = vld [vmem:[#allocation2] sm:$0xff]
    %v44 = vld [vmem:[#allocation2 + $0x8] sm:$0xff]
    %v45 = vld [vmem:[#allocation2 + $0x10] sm:$0xff]
    %v46 = vld [vmem:[#allocation2 + $0x18] sm:$0xff]
    %v47 = vld [vmem:[#allocation2 + $0x20] sm:$0xff]
    %v48 = vld [vmem:[#allocation2 + $0x28] sm:$0xff]
    %v49 = vld [vmem:[#allocation2 + $0x30] sm:$0xff]
    %v50 = vld [vmem:[#allocation2 + $0x38] sm:$0xff]
    %v51 = vld [vmem:[#allocation2 + $0x40] sm:$0xff]
    %v52 = vld [vmem:[#allocation2 + $0x48] sm:$0xff]
    %v53 = vld [vmem:[#allocation2 + $0x50] sm:$0xff]
    %v54 = vld [vmem:[#allocation2 + $0x58] sm:$0xff]
    %v55 = vld [vmem:[#allocation2 + $0x60] sm:$0xff]
    %v56 = vld [vmem:[#allocation2 + $0x68] sm:$0xff]
    %v57 = vld [vmem:[#allocation2 + $0x70] sm:$0xff]
    %v58 = vld [vmem:[#allocation2 + $0x78] sm:$0xff]
    %v59 = vld [vmem:[#allocation5] sm:$0xff]
    %v60 = vld [vmem:[#allocation5 + $0x8] sm:$0xff]
    %v61 = vld [vmem:[#allocation5 + $0x10] sm:$0xff]
    %v62 = vld [vmem:[#allocation5 + $0x18] sm:$0xff]
    %v63 = vld [vmem:[#allocation5 + $0x20] sm:$0xff]
    %v64 = vld [vmem:[#allocation5 + $0x28] sm:$0xff]
    %v65 = vld [vmem:[#allocation5 + $0x30] sm:$0xff]
    %v66 = vld [vmem:[#allocation5 + $0x38] sm:$0xff]
    %v67 = vld [vmem:[#allocation5 + $0x40] sm:$0xff]
    %v68 = vld [vmem:[#allocation5 + $0x48] sm:$0xff]
    %v69 = vld [vmem:[#allocation5 + $0x50] sm:$0xff]
    %v70 = vld [vmem:[#allocation5 + $0x58] sm:$0xff]
    %v71 = vld [vmem:[#allocation5 + $0x60] sm:$0xff]
    %v72 = vld [vmem:[#allocation5 + $0x68] sm:$0xff]
    %v73 = vld [vmem:[#allocation5 + $0x70] sm:$0xff]
    %v74 = vld [vmem:[#allocation5 + $0x78] sm:$0xff]
    %v75 = vld [vmem:[#allocation5 + $0x80] sm:$0xff]
    %v76 = vld [vmem:[#allocation5 + $0x88] sm:$0xff]
    %v77 = vld [vmem:[#allocation5 + $0x90] sm:$0xff]
    %v78 = vld [vmem:[#allocation5 + $0x98] sm:$0xff]
    %v79 = vld [vmem:[#allocation5 + $0xa0] sm:$0xff]
    %v80 = vld [vmem:[#allocation5 + $0xa8] sm:$0xff]
    %v81 = vld [vmem:[#allocation5 + $0xb0] sm:$0xff]
    %v82 = vld [vmem:[#allocation5 + $0xb8] sm:$0xff]
    %v83 = vld [vmem:[#allocation5 + $0xc0] sm:$0xff]
    %v84 = vld [vmem:[#allocation5 + $0xc8] sm:$0xff]
    %v85 = vld [vmem:[#allocation5 + $0xd0] sm:$0xff]
    %v86 = vld [vmem:[#allocation5 + $0xd8] sm:$0xff]
    %v87 = vld [vmem:[#allocation5 + $0xe0] sm:$0xff]
    %v88 = vld [vmem:[#allocation5 + $0xe8] sm:$0xff]
    %v89 = vld [vmem:[#allocation5 + $0xf0] sm:$0xff]
    %v90 = vld [vmem:[#allocation5 + $0xf8] sm:$0xff]
    %v91 = vld [vmem:[#allocation5 + $0x100] sm:$0xff]
    %v92 = vld [vmem:[#allocation5 + $0x108] sm:$0xff]
    %v93 = vld [vmem:[#allocation5 + $0x110] sm:$0xff]
    %v94 = vld [vmem:[#allocation5 + $0x118] sm:$0xff]
    %v95 = vld [vmem:[#allocation5 + $0x120] sm:$0xff]
    %v96 = vld [vmem:[#allocation5 + $0x128] sm:$0xff]
    %v97 = vld [vmem:[#allocation5 + $0x130] sm:$0xff]
    %v98 = vld [vmem:[#allocation5 + $0x138] sm:$0xff]
    %v99 = vld [vmem:[#allocation5 + $0x140] sm:$0xff]
    %v100 = vld [vmem:[#allocation5 + $0x148] sm:$0xff]
    %v101 = vld [vmem:[#allocation5 + $0x150] sm:$0xff]
    %v102 = vld [vmem:[#allocation5 + $0x158] sm:$0xff]
    %v103 = vld [vmem:[#allocation5 + $0x160] sm:$0xff]
    %v104 = vld [vmem:[#allocation5 + $0x168] sm:$0xff]
    %v105 = vld [vmem:[#allocation5 + $0x170] sm:$0xff]
    %v106 = vld [vmem:[#allocation5 + $0x178] sm:$0xff]
    %v107 = vld [vmem:[#allocation5 + $0x180] sm:$0xff]
    %v108 = vld [vmem:[#allocation5 + $0x188] sm:$0xff]
    %v109 = vld [vmem:[#allocation5 + $0x190] sm:$0xff]
    %v110 = vld [vmem:[#allocation5 + $0x198] sm:$0xff]
    %v111 = vld [vmem:[#allocation5 + $0x1a0] sm:$0xff]
    %v112 = vld [vmem:[#allocation5 + $0x1a8] sm:$0xff]
    %v113 = vld [vmem:[#allocation5 + $0x1b0] sm:$0xff]
    %v114 = vld [vmem:[#allocation5 + $0x1b8] sm:$0xff]
    %v115 = vld [vmem:[#allocation5 + $0x1c0] sm:$0xff]
    %v116 = vld [vmem:[#allocation5 + $0x1c8] sm:$0xff]
    %v117 = vld [vmem:[#allocation5 + $0x1d0] sm:$0xff]
    %v118 = vld [vmem:[#allocation5 + $0x1d8] sm:$0xff]
    %v119 = vld [vmem:[#allocation5 + $0x1e0] sm:$0xff]
    %v120 = vld [vmem:[#allocation5 + $0x1e8] sm:$0xff]
    %v121 = vld [vmem:[#allocation5 + $0x1f0] sm:$0xff]
    %v122 = vld [vmem:[#allocation5 + $0x1f8] sm:$0xff]
    %v123 = vld [vmem:[#allocation5 + $0x200] sm:$0xff]
    %v124 = vld [vmem:[#allocation5 + $0x208] sm:$0xff]
    %v125 = vld [vmem:[#allocation5 + $0x210] sm:$0xff]
    %v126 = vld [vmem:[#allocation5 + $0x218] sm:$0xff]
    %v127 = vld [vmem:[#allocation5 + $0x220] sm:$0xff]
    %v128 = vld [vmem:[#allocation5 + $0x228] sm:$0xff]
    %v129 = vld [vmem:[#allocation5 + $0x230] sm:$0xff]
    %v130 = vld [vmem:[#allocation5 + $0x238] sm:$0xff]
    %v131 = vld [vmem:[#allocation5 + $0x240] sm:$0xff]
    %v132 = vld [vmem:[#allocation5 + $0x248] sm:$0xff]
    %v133 = vld [vmem:[#allocation5 + $0x250] sm:$0xff]
    %v134 = vld [vmem:[#allocation5 + $0x258] sm:$0xff]
    %v135 = vld [vmem:[#allocation5 + $0x260] sm:$0xff]
    %v136 = vld [vmem:[#allocation5 + $0x268] sm:$0xff]
    %v137 = vld [vmem:[#allocation5 + $0x270] sm:$0xff]
    %v138 = vld [vmem:[#allocation5 + $0x278] sm:$0xff]
    %v139 = vld [vmem:[#allocation5 + $0x280] sm:$0xff]
    %v140 = vld [vmem:[#allocation5 + $0x288] sm:$0xff]
    %v141 = vld [vmem:[#allocation5 + $0x290] sm:$0xff]
    %v142 = vld [vmem:[#allocation5 + $0x298] sm:$0xff]
    %v143 = vld [vmem:[#allocation5 + $0x2a0] sm:$0xff]
    %v144 = vld [vmem:[#allocation5 + $0x2a8] sm:$0xff]
    %v145 = vld [vmem:[#allocation5 + $0x2b0] sm:$0xff]
    %v146 = vld [vmem:[#allocation5 + $0x2b8] sm:$0xff]
    %v147 = vld [vmem:[#allocation5 + $0x2c0] sm:$0xff]
    %v148 = vld [vmem:[#allocation5 + $0x2c8] sm:$0xff]
    %v149 = vld [vmem:[#allocation5 + $0x2d0] sm:$0xff]
    %v150 = vld [vmem:[#allocation5 + $0x2d8] sm:$0xff]
    %v151 = vld [vmem:[#allocation5 + $0x2e0] sm:$0xff]
    %v152 = vld [vmem:[#allocation5 + $0x2e8] sm:$0xff]
    %v153 = vld [vmem:[#allocation5 + $0x2f0] sm:$0xff]
    %v154 = vld [vmem:[#allocation5 + $0x2f8] sm:$0xff]
    %v155 = vld [vmem:[#allocation5 + $0x300] sm:$0xff]
    %v156 = vld [vmem:[#allocation5 + $0x308] sm:$0xff]
    %v157 = vld [vmem:[#allocation5 + $0x310] sm:$0xff]
    %v158 = vld [vmem:[#allocation5 + $0x318] sm:$0xff]
    %v159 = vld [vmem:[#allocation5 + $0x320] sm:$0xff]
    %v160 = vld [vmem:[#allocation5 + $0x328] sm:$0xff]
    %v161 = vld [vmem:[#allocation5 + $0x330] sm:$0xff]
    %v162 = vld [vmem:[#allocation5 + $0x338] sm:$0xff]
    %v163 = vld [vmem:[#allocation5 + $0x340] sm:$0xff]
    %v164 = vld [vmem:[#allocation5 + $0x348] sm:$0xff]
    %v165 = vld [vmem:[#allocation5 + $0x350] sm:$0xff]
    %v166 = vld [vmem:[#allocation5 + $0x358] sm:$0xff]
    %v167 = vld [vmem:[#allocation5 + $0x360] sm:$0xff]
    %v168 = vld [vmem:[#allocation5 + $0x368] sm:$0xff]
    %v169 = vld [vmem:[#allocation5 + $0x370] sm:$0xff]
    %v170 = vld [vmem:[#allocation5 + $0x378] sm:$0xff]
    %v171 = vld [vmem:[#allocation5 + $0x380] sm:$0xff]
    %v172 = vld [vmem:[#allocation5 + $0x388] sm:$0xff]
    %v173 = vld [vmem:[#allocation5 + $0x390] sm:$0xff]
    %v174 = vld [vmem:[#allocation5 + $0x398] sm:$0xff]
    %v175 = vld [vmem:[#allocation5 + $0x3a0] sm:$0xff]
    %v176 = vld [vmem:[#allocation5 + $0x3a8] sm:$0xff]
    %v177 = vld [vmem:[#allocation5 + $0x3b0] sm:$0xff]
    %v178 = vld [vmem:[#allocation5 + $0x3b8] sm:$0xff]
    %v179 = vld [vmem:[#allocation5 + $0x3c0] sm:$0xff]
    %v180 = vld [vmem:[#allocation5 + $0x3c8] sm:$0xff]
    %v181 = vld [vmem:[#allocation5 + $0x3d0] sm:$0xff]
    %v182 = vld [vmem:[#allocation5 + $0x3d8] sm:$0xff]
    %v183 = vld [vmem:[#allocation5 + $0x3e0] sm:$0xff]
    %v184 = vld [vmem:[#allocation5 + $0x3e8] sm:$0xff]
    %v185 = vld [vmem:[#allocation5 + $0x3f0] sm:$0xff]
    %v186 = vld [vmem:[#allocation5 + $0x3f8] sm:$0xff]
    %v187 = vld [vmem:[%s2] sm:$0x3]
    %v189 = vlaneseq
    %v190 = vshrl.u32 %v189, 7
    %v191 = vsub.s32 0, %v190
    %v192 = vrot.slane %v187, %v191
    %v193 = vlaneseq
    %v194 = vshrl.u32 %v193, 7
    %v195 = vsub.s32 1, %v194
    %v196 = vrot.slane %v187, %v195
    %v215 = vunpack.c.l.b16 %v43
    %v216 = vunpack.c.h.b16 %v43
    %v217 = vunpack.c.l.b16 %v44
    %v218 = vunpack.c.h.b16 %v44
    %v219 = vunpack.c.l.b16 %v45
    %v220 = vunpack.c.h.b16 %v45
    %v221 = vunpack.c.l.b16 %v46
    %v222 = vunpack.c.h.b16 %v46
    %v223 = vunpack.c.l.b16 %v47
    %v224 = vunpack.c.h.b16 %v47
    %v225 = vunpack.c.l.b16 %v48
    %v226 = vunpack.c.h.b16 %v48
    %v227 = vunpack.c.l.b16 %v49
    %v228 = vunpack.c.h.b16 %v49
    %v229 = vunpack.c.l.b16 %v50
    %v230 = vunpack.c.h.b16 %v50
    %v231 = vunpack.c.l.b16 %v51
    %v232 = vunpack.c.h.b16 %v51
    %v233 = vunpack.c.l.b16 %v52
    %v234 = vunpack.c.h.b16 %v52
    %v235 = vunpack.c.l.b16 %v53
    %v236 = vunpack.c.h.b16 %v53
    %v237 = vunpack.c.l.b16 %v54
    %v238 = vunpack.c.h.b16 %v54
    %v239 = vunpack.c.l.b16 %v55
    %v240 = vunpack.c.h.b16 %v55
    %v241 = vunpack.c.l.b16 %v56
    %v242 = vunpack.c.h.b16 %v56
    %v243 = vunpack.c.l.b16 %v57
    %v244 = vunpack.c.h.b16 %v57
    %v245 = vunpack.c.l.b16 %v58
    %v246 = vunpack.c.h.b16 %v58
    %v247 = vpack.c.b16 %v223, %v215
    %v248 = vpack.c.b16 %v224, %v216
    %v249 = vpack.c.b16 %v225, %v217
    %v250 = vpack.c.b16 %v226, %v218
    %v251 = vpack.c.b16 %v227, %v219
    %v252 = vpack.c.b16 %v228, %v220
    %v253 = vpack.c.b16 %v229, %v221
    %v254 = vpack.c.b16 %v230, %v222
    %v255 = vpack.c.b16 %v239, %v231
    %v256 = vpack.c.b16 %v240, %v232
    %v257 = vpack.c.b16 %v241, %v233
    %v258 = vpack.c.b16 %v242, %v234
    %v259 = vpack.c.b16 %v243, %v235
    %v260 = vpack.c.b16 %v244, %v236
    %v261 = vpack.c.b16 %v245, %v237
    %v262 = vpack.c.b16 %v246, %v238
    %v407 = vunpack.c.l.b16 %v59
    %v408 = vunpack.c.h.b16 %v59
    %v409 = vunpack.c.l.b16 %v60
    %v410 = vunpack.c.h.b16 %v60
    %v411 = vunpack.c.l.b16 %v61
    %v412 = vunpack.c.h.b16 %v61
    %v413 = vunpack.c.l.b16 %v62
    %v414 = vunpack.c.h.b16 %v62
    %v415 = vunpack.c.l.b16 %v63
    %v416 = vunpack.c.h.b16 %v63
    %v417 = vunpack.c.l.b16 %v64
    %v418 = vunpack.c.h.b16 %v64
    %v419 = vunpack.c.l.b16 %v65
    %v420 = vunpack.c.h.b16 %v65
    %v421 = vunpack.c.l.b16 %v66
    %v422 = vunpack.c.h.b16 %v66
    %v423 = vunpack.c.l.b16 %v67
    %v424 = vunpack.c.h.b16 %v67
    %v425 = vunpack.c.l.b16 %v68
    %v426 = vunpack.c.h.b16 %v68
    %v427 = vunpack.c.l.b16 %v69
    %v428 = vunpack.c.h.b16 %v69
    %v429 = vunpack.c.l.b16 %v70
    %v430 = vunpack.c.h.b16 %v70
    %v431 = vunpack.c.l.b16 %v71
    %v432 = vunpack.c.h.b16 %v71
    %v433 = vunpack.c.l.b16 %v72
    %v434 = vunpack.c.h.b16 %v72
    %v435 = vunpack.c.l.b16 %v73
    %v436 = vunpack.c.h.b16 %v73
    %v437 = vunpack.c.l.b16 %v74
    %v438 = vunpack.c.h.b16 %v74
    %v439 = vunpack.c.l.b16 %v75
    %v440 = vunpack.c.h.b16 %v75
    %v441 = vunpack.c.l.b16 %v76
    %v442 = vunpack.c.h.b16 %v76
    %v443 = vunpack.c.l.b16 %v77
    %v444 = vunpack.c.h.b16 %v77
    %v445 = vunpack.c.l.b16 %v78
    %v446 = vunpack.c.h.b16 %v78
    %v447 = vunpack.c.l.b16 %v79
    %v448 = vunpack.c.h.b16 %v79
    %v449 = vunpack.c.l.b16 %v80
    %v450 = vunpack.c.h.b16 %v80
    %v451 = vunpack.c.l.b16 %v81
    %v452 = vunpack.c.h.b16 %v81
    %v453 = vunpack.c.l.b16 %v82
    %v454 = vunpack.c.h.b16 %v82
    %v455 = vunpack.c.l.b16 %v83
    %v456 = vunpack.c.h.b16 %v83
    %v457 = vunpack.c.l.b16 %v84
    %v458 = vunpack.c.h.b16 %v84
    %v459 = vunpack.c.l.b16 %v85
    %v460 = vunpack.c.h.b16 %v85
    %v461 = vunpack.c.l.b16 %v86
    %v462 = vunpack.c.h.b16 %v86
    %v463 = vunpack.c.l.b16 %v87
    %v464 = vunpack.c.h.b16 %v87
    %v465 = vunpack.c.l.b16 %v88
    %v466 = vunpack.c.h.b16 %v88
    %v467 = vunpack.c.l.b16 %v89
    %v468 = vunpack.c.h.b16 %v89
    %v469 = vunpack.c.l.b16 %v90
    %v470 = vunpack.c.h.b16 %v90
    %v471 = vunpack.c.l.b16 %v91
    %v472 = vunpack.c.h.b16 %v91
    %v473 = vunpack.c.l.b16 %v92
    %v474 = vunpack.c.h.b16 %v92
    %v475 = vunpack.c.l.b16 %v93
    %v476 = vunpack.c.h.b16 %v93
    %v477 = vunpack.c.l.b16 %v94
    %v478 = vunpack.c.h.b16 %v94
    %v479 = vunpack.c.l.b16 %v95
    %v480 = vunpack.c.h.b16 %v95
    %v481 = vunpack.c.l.b16 %v96
    %v482 = vunpack.c.h.b16 %v96
    %v483 = vunpack.c.l.b16 %v97
    %v484 = vunpack.c.h.b16 %v97
    %v485 = vunpack.c.l.b16 %v98
    %v486 = vunpack.c.h.b16 %v98
    %v487 = vunpack.c.l.b16 %v99
    %v488 = vunpack.c.h.b16 %v99
    %v489 = vunpack.c.l.b16 %v100
    %v490 = vunpack.c.h.b16 %v100
    %v491 = vunpack.c.l.b16 %v101
    %v492 = vunpack.c.h.b16 %v101
    %v493 = vunpack.c.l.b16 %v102
    %v494 = vunpack.c.h.b16 %v102
    %v495 = vunpack.c.l.b16 %v103
    %v496 = vunpack.c.h.b16 %v103
    %v497 = vunpack.c.l.b16 %v104
    %v498 = vunpack.c.h.b16 %v104
    %v499 = vunpack.c.l.b16 %v105
    %v500 = vunpack.c.h.b16 %v105
    %v501 = vunpack.c.l.b16 %v106
    %v502 = vunpack.c.h.b16 %v106
    %v503 = vunpack.c.l.b16 %v107
    %v504 = vunpack.c.h.b16 %v107
    %v505 = vunpack.c.l.b16 %v108
    %v506 = vunpack.c.h.b16 %v108
    %v507 = vunpack.c.l.b16 %v109
    %v508 = vunpack.c.h.b16 %v109
    %v509 = vunpack.c.l.b16 %v110
    %v510 = vunpack.c.h.b16 %v110
    %v511 = vunpack.c.l.b16 %v111
    %v512 = vunpack.c.h.b16 %v111
    %v513 = vunpack.c.l.b16 %v112
    %v514 = vunpack.c.h.b16 %v112
    %v515 = vunpack.c.l.b16 %v113
    %v516 = vunpack.c.h.b16 %v113
    %v517 = vunpack.c.l.b16 %v114
    %v518 = vunpack.c.h.b16 %v114
    %v519 = vunpack.c.l.b16 %v115
    %v520 = vunpack.c.h.b16 %v115
    %v521 = vunpack.c.l.b16 %v116
    %v522 = vunpack.c.h.b16 %v116
    %v523 = vunpack.c.l.b16 %v117
    %v524 = vunpack.c.h.b16 %v117
    %v525 = vunpack.c.l.b16 %v118
    %v526 = vunpack.c.h.b16 %v118
    %v527 = vunpack.c.l.b16 %v119
    %v528 = vunpack.c.h.b16 %v119
    %v529 = vunpack.c.l.b16 %v120
    %v530 = vunpack.c.h.b16 %v120
    %v531 = vunpack.c.l.b16 %v121
    %v532 = vunpack.c.h.b16 %v121
    %v533 = vunpack.c.l.b16 %v122
    %v534 = vunpack.c.h.b16 %v122
    %v535 = vunpack.c.l.b16 %v123
    %v536 = vunpack.c.h.b16 %v123
    %v537 = vunpack.c.l.b16 %v124
    %v538 = vunpack.c.h.b16 %v124
    %v539 = vunpack.c.l.b16 %v125
    %v540 = vunpack.c.h.b16 %v125
    %v541 = vunpack.c.l.b16 %v126
    %v542 = vunpack.c.h.b16 %v126
    %v543 = vunpack.c.l.b16 %v127
    %v544 = vunpack.c.h.b16 %v127
    %v545 = vunpack.c.l.b16 %v128
    %v546 = vunpack.c.h.b16 %v128
    %v547 = vunpack.c.l.b16 %v129
    %v548 = vunpack.c.h.b16 %v129
    %v549 = vunpack.c.l.b16 %v130
    %v550 = vunpack.c.h.b16 %v130
    %v551 = vunpack.c.l.b16 %v131
    %v552 = vunpack.c.h.b16 %v131
    %v553 = vunpack.c.l.b16 %v132
    %v554 = vunpack.c.h.b16 %v132
    %v555 = vunpack.c.l.b16 %v133
    %v556 = vunpack.c.h.b16 %v133
    %v557 = vunpack.c.l.b16 %v134
    %v558 = vunpack.c.h.b16 %v134
    %v559 = vunpack.c.l.b16 %v135
    %v560 = vunpack.c.h.b16 %v135
    %v561 = vunpack.c.l.b16 %v136
    %v562 = vunpack.c.h.b16 %v136
    %v563 = vunpack.c.l.b16 %v137
    %v564 = vunpack.c.h.b16 %v137
    %v565 = vunpack.c.l.b16 %v138
    %v566 = vunpack.c.h.b16 %v138
    %v567 = vunpack.c.l.b16 %v139
    %v568 = vunpack.c.h.b16 %v139
    %v569 = vunpack.c.l.b16 %v140
    %v570 = vunpack.c.h.b16 %v140
    %v571 = vunpack.c.l.b16 %v141
    %v572 = vunpack.c.h.b16 %v141
    %v573 = vunpack.c.l.b16 %v142
    %v574 = vunpack.c.h.b16 %v142
    %v575 = vunpack.c.l.b16 %v143
    %v576 = vunpack.c.h.b16 %v143
    %v577 = vunpack.c.l.b16 %v144
    %v578 = vunpack.c.h.b16 %v144
    %v579 = vunpack.c.l.b16 %v145
    %v580 = vunpack.c.h.b16 %v145
    %v581 = vunpack.c.l.b16 %v146
    %v582 = vunpack.c.h.b16 %v146
    %v583 = vunpack.c.l.b16 %v147
    %v584 = vunpack.c.h.b16 %v147
    %v585 = vunpack.c.l.b16 %v148
    %v586 = vunpack.c.h.b16 %v148
    %v587 = vunpack.c.l.b16 %v149
    %v588 = vunpack.c.h.b16 %v149
    %v589 = vunpack.c.l.b16 %v150
    %v590 = vunpack.c.h.b16 %v150
    %v591 = vunpack.c.l.b16 %v151
    %v592 = vunpack.c.h.b16 %v151
    %v593 = vunpack.c.l.b16 %v152
    %v594 = vunpack.c.h.b16 %v152
    %v595 = vunpack.c.l.b16 %v153
    %v596 = vunpack.c.h.b16 %v153
    %v597 = vunpack.c.l.b16 %v154
    %v598 = vunpack.c.h.b16 %v154
    %v599 = vunpack.c.l.b16 %v155
    %v600 = vunpack.c.h.b16 %v155
    %v601 = vunpack.c.l.b16 %v156
    %v602 = vunpack.c.h.b16 %v156
    %v603 = vunpack.c.l.b16 %v157
    %v604 = vunpack.c.h.b16 %v157
    %v605 = vunpack.c.l.b16 %v158
    %v606 = vunpack.c.h.b16 %v158
    %v607 = vunpack.c.l.b16 %v159
    %v608 = vunpack.c.h.b16 %v159
    %v609 = vunpack.c.l.b16 %v160
    %v610 = vunpack.c.h.b16 %v160
    %v611 = vunpack.c.l.b16 %v161
    %v612 = vunpack.c.h.b16 %v161
    %v613 = vunpack.c.l.b16 %v162
    %v614 = vunpack.c.h.b16 %v162
    %v615 = vunpack.c.l.b16 %v163
    %v616 = vunpack.c.h.b16 %v163
    %v617 = vunpack.c.l.b16 %v164
    %v618 = vunpack.c.h.b16 %v164
    %v619 = vunpack.c.l.b16 %v165
    %v620 = vunpack.c.h.b16 %v165
    %v621 = vunpack.c.l.b16 %v166
    %v622 = vunpack.c.h.b16 %v166
    %v623 = vunpack.c.l.b16 %v167
    %v624 = vunpack.c.h.b16 %v167
    %v625 = vunpack.c.l.b16 %v168
    %v626 = vunpack.c.h.b16 %v168
    %v627 = vunpack.c.l.b16 %v169
    %v628 = vunpack.c.h.b16 %v169
    %v629 = vunpack.c.l.b16 %v170
    %v630 = vunpack.c.h.b16 %v170
    %v631 = vunpack.c.l.b16 %v171
    %v632 = vunpack.c.h.b16 %v171
    %v633 = vunpack.c.l.b16 %v172
    %v634 = vunpack.c.h.b16 %v172
    %v635 = vunpack.c.l.b16 %v173
    %v636 = vunpack.c.h.b16 %v173
    %v637 = vunpack.c.l.b16 %v174
    %v638 = vunpack.c.h.b16 %v174
    %v639 = vunpack.c.l.b16 %v175
    %v640 = vunpack.c.h.b16 %v175
    %v641 = vunpack.c.l.b16 %v176
    %v642 = vunpack.c.h.b16 %v176
    %v643 = vunpack.c.l.b16 %v177
    %v644 = vunpack.c.h.b16 %v177
    %v645 = vunpack.c.l.b16 %v178
    %v646 = vunpack.c.h.b16 %v178
    %v647 = vunpack.c.l.b16 %v179
    %v648 = vunpack.c.h.b16 %v179
    %v649 = vunpack.c.l.b16 %v180
    %v650 = vunpack.c.h.b16 %v180
    %v651 = vunpack.c.l.b16 %v181
    %v652 = vunpack.c.h.b16 %v181
    %v653 = vunpack.c.l.b16 %v182
    %v654 = vunpack.c.h.b16 %v182
    %v655 = vunpack.c.l.b16 %v183
    %v656 = vunpack.c.h.b16 %v183
    %v657 = vunpack.c.l.b16 %v184
    %v658 = vunpack.c.h.b16 %v184
    %v659 = vunpack.c.l.b16 %v185
    %v660 = vunpack.c.h.b16 %v185
    %v661 = vunpack.c.l.b16 %v186
    %v662 = vunpack.c.h.b16 %v186
    %v663 = vpack.c.b16 %v409, %v407
    %v664 = vpack.c.b16 %v410, %v408
    %v665 = vpack.c.b16 %v413, %v411
    %v666 = vpack.c.b16 %v414, %v412
    %v667 = vpack.c.b16 %v417, %v415
    %v668 = vpack.c.b16 %v418, %v416
    %v669 = vpack.c.b16 %v421, %v419
    %v670 = vpack.c.b16 %v422, %v420
    %v671 = vpack.c.b16 %v425, %v423
    %v672 = vpack.c.b16 %v426, %v424
    %v673 = vpack.c.b16 %v429, %v427
    %v674 = vpack.c.b16 %v430, %v428
    %v675 = vpack.c.b16 %v433, %v431
    %v676 = vpack.c.b16 %v434, %v432
    %v677 = vpack.c.b16 %v437, %v435
    %v678 = vpack.c.b16 %v438, %v436
    %v679 = vpack.c.b16 %v441, %v439
    %v680 = vpack.c.b16 %v442, %v440
    %v681 = vpack.c.b16 %v445, %v443
    %v682 = vpack.c.b16 %v446, %v444
    %v683 = vpack.c.b16 %v449, %v447
    %v684 = vpack.c.b16 %v450, %v448
    %v685 = vpack.c.b16 %v453, %v451
    %v686 = vpack.c.b16 %v454, %v452
    %v687 = vpack.c.b16 %v457, %v455
    %v688 = vpack.c.b16 %v458, %v456
    %v689 = vpack.c.b16 %v461, %v459
    %v690 = vpack.c.b16 %v462, %v460
    %v691 = vpack.c.b16 %v465, %v463
    %v692 = vpack.c.b16 %v466, %v464
    %v693 = vpack.c.b16 %v469, %v467
    %v694 = vpack.c.b16 %v470, %v468
    %v695 = vpack.c.b16 %v473, %v471
    %v696 = vpack.c.b16 %v474, %v472
    %v697 = vpack.c.b16 %v477, %v475
    %v698 = vpack.c.b16 %v478, %v476
    %v699 = vpack.c.b16 %v481, %v479
    %v700 = vpack.c.b16 %v482, %v480
    %v701 = vpack.c.b16 %v485, %v483
    %v702 = vpack.c.b16 %v486, %v484
    %v703 = vpack.c.b16 %v489, %v487
    %v704 = vpack.c.b16 %v490, %v488
    %v705 = vpack.c.b16 %v493, %v491
    %v706 = vpack.c.b16 %v494, %v492
    %v707 = vpack.c.b16 %v497, %v495
    %v708 = vpack.c.b16 %v498, %v496
    %v709 = vpack.c.b16 %v501, %v499
    %v710 = vpack.c.b16 %v502, %v500
    %v711 = vpack.c.b16 %v505, %v503
    %v712 = vpack.c.b16 %v506, %v504
    %v713 = vpack.c.b16 %v509, %v507
    %v714 = vpack.c.b16 %v510, %v508
    %v715 = vpack.c.b16 %v513, %v511
    %v716 = vpack.c.b16 %v514, %v512
    %v717 = vpack.c.b16 %v517, %v515
    %v718 = vpack.c.b16 %v518, %v516
    %v719 = vpack.c.b16 %v521, %v519
    %v720 = vpack.c.b16 %v522, %v520
    %v721 = vpack.c.b16 %v525, %v523
    %v722 = vpack.c.b16 %v526, %v524
    %v723 = vpack.c.b16 %v529, %v527
    %v724 = vpack.c.b16 %v530, %v528
    %v725 = vpack.c.b16 %v533, %v531
    %v726 = vpack.c.b16 %v534, %v532
    %v727 = vpack.c.b16 %v537, %v535
    %v728 = vpack.c.b16 %v538, %v536
    %v729 = vpack.c.b16 %v541, %v539
    %v730 = vpack.c.b16 %v542, %v540
    %v731 = vpack.c.b16 %v545, %v543
    %v732 = vpack.c.b16 %v546, %v544
    %v733 = vpack.c.b16 %v549, %v547
    %v734 = vpack.c.b16 %v550, %v548
    %v735 = vpack.c.b16 %v553, %v551
    %v736 = vpack.c.b16 %v554, %v552
    %v737 = vpack.c.b16 %v557, %v555
    %v738 = vpack.c.b16 %v558, %v556
    %v739 = vpack.c.b16 %v561, %v559
    %v740 = vpack.c.b16 %v562, %v560
    %v741 = vpack.c.b16 %v565, %v563
    %v742 = vpack.c.b16 %v566, %v564
    %v743 = vpack.c.b16 %v569, %v567
    %v744 = vpack.c.b16 %v570, %v568
    %v745 = vpack.c.b16 %v573, %v571
    %v746 = vpack.c.b16 %v574, %v572
    %v747 = vpack.c.b16 %v577, %v575
    %v748 = vpack.c.b16 %v578, %v576
    %v749 = vpack.c.b16 %v581, %v579
    %v750 = vpack.c.b16 %v582, %v580
    %v751 = vpack.c.b16 %v585, %v583
    %v752 = vpack.c.b16 %v586, %v584
    %v753 = vpack.c.b16 %v589, %v587
    %v754 = vpack.c.b16 %v590, %v588
    %v755 = vpack.c.b16 %v593, %v591
    %v756 = vpack.c.b16 %v594, %v592
    %v757 = vpack.c.b16 %v597, %v595
    %v758 = vpack.c.b16 %v598, %v596
    %v759 = vpack.c.b16 %v601, %v599
    %v760 = vpack.c.b16 %v602, %v600
    %v761 = vpack.c.b16 %v605, %v603
    %v762 = vpack.c.b16 %v606, %v604
    %v763 = vpack.c.b16 %v609, %v607
    %v764 = vpack.c.b16 %v610, %v608
    %v765 = vpack.c.b16 %v613, %v611
    %v766 = vpack.c.b16 %v614, %v612
    %v767 = vpack.c.b16 %v617, %v615
    %v768 = vpack.c.b16 %v618, %v616
    %v769 = vpack.c.b16 %v621, %v619
    %v770 = vpack.c.b16 %v622, %v620
    %v771 = vpack.c.b16 %v625, %v623
    %v772 = vpack.c.b16 %v626, %v624
    %v773 = vpack.c.b16 %v629, %v627
    %v774 = vpack.c.b16 %v630, %v628
    %v775 = vpack.c.b16 %v633, %v631
    %v776 = vpack.c.b16 %v634, %v632
    %v777 = vpack.c.b16 %v637, %v635
    %v778 = vpack.c.b16 %v638, %v636
    %v779 = vpack.c.b16 %v641, %v639
    %v780 = vpack.c.b16 %v642, %v640
    %v781 = vpack.c.b16 %v645, %v643
    %v782 = vpack.c.b16 %v646, %v644
    %v783 = vpack.c.b16 %v649, %v647
    %v784 = vpack.c.b16 %v650, %v648
    %v785 = vpack.c.b16 %v653, %v651
    %v786 = vpack.c.b16 %v654, %v652
    %v787 = vpack.c.b16 %v657, %v655
    %v788 = vpack.c.b16 %v658, %v656
    %v789 = vpack.c.b16 %v661, %v659
    %v790 = vpack.c.b16 %v662, %v660
    %919 = vmatprep.subr.bf16.mxu0 %v664
    %920 = vmatpush1.bf16.msra.mxu0 %v663
    %921 = vmatprep.subr.bf16.mxu0 %v666
    %922 = vmatpush1.bf16.msra.mxu0 %v665
    %923 = vmatprep.subr.bf16.mxu0 %v668
    %924 = vmatpush1.bf16.msra.mxu0 %v667
    %925 = vmatprep.subr.bf16.mxu0 %v670
    %926 = vmatpush1.bf16.msra.mxu0 %v669
    %927 = vmatprep.subr.bf16.mxu0 %v672
    %928 = vmatpush1.bf16.msra.mxu0 %v671
    %929 = vmatprep.subr.bf16.mxu0 %v674
    %930 = vmatpush1.bf16.msra.mxu0 %v673
    %931 = vmatprep.subr.bf16.mxu0 %v676
    %932 = vmatpush1.bf16.msra.mxu0 %v675
    %933 = vmatprep.subr.bf16.mxu0 %v678
    %934 = vmatpush1.bf16.msra.mxu0 %v677
    %935 = vmatprep.subr.bf16.mxu0 %v680
    %936 = vmatpush1.bf16.msra.mxu0 %v679
    %937 = vmatprep.subr.bf16.mxu0 %v682
    %938 = vmatpush1.bf16.msra.mxu0 %v681
    %939 = vmatprep.subr.bf16.mxu0 %v684
    %940 = vmatpush1.bf16.msra.mxu0 %v683
    %941 = vmatprep.subr.bf16.mxu0 %v686
    %942 = vmatpush1.bf16.msra.mxu0 %v685
    %943 = vmatprep.subr.bf16.mxu0 %v688
    %944 = vmatpush1.bf16.msra.mxu0 %v687
    %945 = vmatprep.subr.bf16.mxu0 %v690
    %946 = vmatpush1.bf16.msra.mxu0 %v689
    %947 = vmatprep.subr.bf16.mxu0 %v692
    %948 = vmatpush1.bf16.msra.mxu0 %v691
    %949 = vmatprep.subr.bf16.mxu0 %v694
    %950 = vmatpush1.bf16.msra.mxu0 %v693
    %951 = vmatprep.mubr.bf16.mxu0 %v248
    %952 = vmatmul.mubr.bf16.gmra.mrb[0].mxu0 %v247
    %v953 = vpop.f32.mrb[0].mxu0
    %v954 = vadd.f32 %v192, %v953
    %v955 = vpop.f32.mrb[0].mxu0
    %v956 = vadd.f32 %v196, %v955
    %v957 = vpop.f32.mrb[0].mxu0
    %v958 = vadd.f32 %v192, %v957
    %v959 = vpop.f32.mrb[0].mxu0
    %v960 = vadd.f32 %v196, %v959
    %961 = vmatprep.mubr.bf16.mxu0 %v256
    %962 = vmatmul.mubr.bf16.gmra.mrb[0].mxu0 %v255
    %v963 = vpop.f32.mrb[0].mxu0
    %v964 = vadd.f32 %v192, %v963
    %v965 = vpop.f32.mrb[0].mxu0
    %v966 = vadd.f32 %v196, %v965
    %v967 = vpop.f32.mrb[0].mxu0
    %v968 = vadd.f32 %v192, %v967
    %v969 = vpop.f32.mrb[0].mxu0
    %v970 = vadd.f32 %v196, %v969
    %971 = vdwg.mxu0
    %972 = vmatprep.subr.bf16.mxu0 %v696
    %973 = vmatpush1.bf16.msra.mxu0 %v695
    %974 = vmatprep.subr.bf16.mxu0 %v698
    %975 = vmatpush1.bf16.msra.mxu0 %v697
    %976 = vmatprep.subr.bf16.mxu0 %v700
    %977 = vmatpush1.bf16.msra.mxu0 %v699
    %978 = vmatprep.subr.bf16.mxu0 %v702
    %979 = vmatpush1.bf16.msra.mxu0 %v701
    %980 = vmatprep.subr.bf16.mxu0 %v704
    %981 = vmatpush1.bf16.msra.mxu0 %v703
    %982 = vmatprep.subr.bf16.mxu0 %v706
    %983 = vmatpush1.bf16.msra.mxu0 %v705
    %984 = vmatprep.subr.bf16.mxu0 %v708
    %985 = vmatpush1.bf16.msra.mxu0 %v707
    %986 = vmatprep.subr.bf16.mxu0 %v710
    %987 = vmatpush1.bf16.msra.mxu0 %v709
    %988 = vmatprep.subr.bf16.mxu0 %v712
    %989 = vmatpush1.bf16.msra.mxu0 %v711
    %990 = vmatprep.subr.bf16.mxu0 %v714
    %991 = vmatpush1.bf16.msra.mxu0 %v713
    %992 = vmatprep.subr.bf16.mxu0 %v716
    %993 = vmatpush1.bf16.msra.mxu0 %v715
    %994 = vmatprep.subr.bf16.mxu0 %v718
    %995 = vmatpush1.bf16.msra.mxu0 %v717
    %996 = vmatprep.subr.bf16.mxu0 %v720
    %997 = vmatpush1.bf16.msra.mxu0 %v719
    %998 = vmatprep.subr.bf16.mxu0 %v722
    %999 = vmatpush1.bf16.msra.mxu0 %v721
    %1000 = vmatprep.subr.bf16.mxu0 %v724
    %1001 = vmatpush1.bf16.msra.mxu0 %v723
    %1002 = vmatprep.subr.bf16.mxu0 %v726
    %1003 = vmatpush1.bf16.msra.mxu0 %v725
    %1004 = vmatprep.mubr.bf16.mxu0 %v250
    %1005 = vmatmul.mubr.bf16.gmra.mrb[0].mxu0 %v249
    %v1006 = vpop.f32.mrb[0].mxu0
    %v1007 = vadd.f32 %v954, %v1006
    %v1008 = vpop.f32.mrb[0].mxu0
    %v1009 = vadd.f32 %v956, %v1008
    %v1010 = vpop.f32.mrb[0].mxu0
    %v1011 = vadd.f32 %v958, %v1010
    %v1012 = vpop.f32.mrb[0].mxu0
    %v1013 = vadd.f32 %v960, %v1012
    %1014 = vmatprep.mubr.bf16.mxu0 %v258
    %1015 = vmatmul.mubr.bf16.gmra.mrb[0].mxu0 %v257
    %v1016 = vpop.f32.mrb[0].mxu0
    %v1017 = vadd.f32 %v964, %v1016
    %v1018 = vpop.f32.mrb[0].mxu0
    %v1019 = vadd.f32 %v966, %v1018
    %v1020 = vpop.f32.mrb[0].mxu0
    %v1021 = vadd.f32 %v968, %v1020
    %v1022 = vpop.f32.mrb[0].mxu0
    %v1023 = vadd.f32 %v970, %v1022
    %1024 = vdwg.mxu0
    %1025 = vmatprep.subr.bf16.mxu0 %v728
    %1026 = vmatpush1.bf16.msra.mxu0 %v727
    %1027 = vmatprep.subr.bf16.mxu0 %v730
    %1028 = vmatpush1.bf16.msra.mxu0 %v729
    %1029 = vmatprep.subr.bf16.mxu0 %v732
    %1030 = vmatpush1.bf16.msra.mxu0 %v731
    %1031 = vmatprep.subr.bf16.mxu0 %v734
    %1032 = vmatpush1.bf16.msra.mxu0 %v733
    %1033 = vmatprep.subr.bf16.mxu0 %v736
    %1034 = vmatpush1.bf16.msra.mxu0 %v735
    %1035 = vmatprep.subr.bf16.mxu0 %v738
    %1036 = vmatpush1.bf16.msra.mxu0 %v737
    %1037 = vmatprep.subr.bf16.mxu0 %v740
    %1038 = vmatpush1.bf16.msra.mxu0 %v739
    %1039 = vmatprep.subr.bf16.mxu0 %v742
    %1040 = vmatpush1.bf16.msra.mxu0 %v741
    %1041 = vmatprep.subr.bf16.mxu0 %v744
    %1042 = vmatpush1.bf16.msra.mxu0 %v743
    %1043 = vmatprep.subr.bf16.mxu0 %v746
    %1044 = vmatpush1.bf16.msra.mxu0 %v745
    %1045 = vmatprep.subr.bf16.mxu0 %v748
    %1046 = vmatpush1.bf16.msra.mxu0 %v747
    %1047 = vmatprep.subr.bf16.mxu0 %v750
    %1048 = vmatpush1.bf16.msra.mxu0 %v749
    %1049 = vmatprep.subr.bf16.mxu0 %v752
    %1050 = vmatpush1.bf16.msra.mxu0 %v751
    %1051 = vmatprep.subr.bf16.mxu0 %v754
    %1052 = vmatpush1.bf16.msra.mxu0 %v753
    %1053 = vmatprep.subr.bf16.mxu0 %v756
    %1054 = vmatpush1.bf16.msra.mxu0 %v755
    %1055 = vmatprep.subr.bf16.mxu0 %v758
    %1056 = vmatpush1.bf16.msra.mxu0 %v757
    %1057 = vmatprep.mubr.bf16.mxu0 %v252
    %1058 = vmatmul.mubr.bf16.gmra.mrb[0].mxu0 %v251
    %v1059 = vpop.f32.mrb[0].mxu0
    %v1060 = vadd.f32 %v1007, %v1059
    %v1061 = vpop.f32.mrb[0].mxu0
    %v1062 = vadd.f32 %v1009, %v1061
    %v1063 = vpop.f32.mrb[0].mxu0
    %v1064 = vadd.f32 %v1011, %v1063
    %v1065 = vpop.f32.mrb[0].mxu0
    %v1066 = vadd.f32 %v1013, %v1065
    %1067 = vmatprep.mubr.bf16.mxu0 %v260
    %1068 = vmatmul.mubr.bf16.gmra.mrb[0].mxu0 %v259
    %v1069 = vpop.f32.mrb[0].mxu0
    %v1070 = vadd.f32 %v1017, %v1069
    %v1071 = vpop.f32.mrb[0].mxu0
    %v1072 = vadd.f32 %v1019, %v1071
    %v1073 = vpop.f32.mrb[0].mxu0
    %v1074 = vadd.f32 %v1021, %v1073
    %v1075 = vpop.f32.mrb[0].mxu0
    %v1076 = vadd.f32 %v1023, %v1075
    %1077 = vdwg.mxu0
    %1078 = vmatprep.subr.bf16.mxu0 %v760
    %1079 = vmatpush1.bf16.msra.mxu0 %v759
    %1080 = vmatprep.subr.bf16.mxu0 %v762
    %1081 = vmatpush1.bf16.msra.mxu0 %v761
    %1082 = vmatprep.subr.bf16.mxu0 %v764
    %1083 = vmatpush1.bf16.msra.mxu0 %v763
    %1084 = vmatprep.subr.bf16.mxu0 %v766
    %1085 = vmatpush1.bf16.msra.mxu0 %v765
    %1086 = vmatprep.subr.bf16.mxu0 %v768
    %1087 = vmatpush1.bf16.msra.mxu0 %v767
    %1088 = vmatprep.subr.bf16.mxu0 %v770
    %1089 = vmatpush1.bf16.msra.mxu0 %v769
    %1090 = vmatprep.subr.bf16.mxu0 %v772
    %1091 = vmatpush1.bf16.msra.mxu0 %v771
    %1092 = vmatprep.subr.bf16.mxu0 %v774
    %1093 = vmatpush1.bf16.msra.mxu0 %v773
    %1094 = vmatprep.subr.bf16.mxu0 %v776
    %1095 = vmatpush1.bf16.msra.mxu0 %v775
    %1096 = vmatprep.subr.bf16.mxu0 %v778
    %1097 = vmatpush1.bf16.msra.mxu0 %v777
    %1098 = vmatprep.subr.bf16.mxu0 %v780
    %1099 = vmatpush1.bf16.msra.mxu0 %v779
    %1100 = vmatprep.subr.bf16.mxu0 %v782
    %1101 = vmatpush1.bf16.msra.mxu0 %v781
    %1102 = vmatprep.subr.bf16.mxu0 %v784
    %1103 = vmatpush1.bf16.msra.mxu0 %v783
    %1104 = vmatprep.subr.bf16.mxu0 %v786
    %1105 = vmatpush1.bf16.msra.mxu0 %v785
    %1106 = vmatprep.subr.bf16.mxu0 %v788
    %1107 = vmatpush1.bf16.msra.mxu0 %v787
    %1108 = vmatprep.subr.bf16.mxu0 %v790
    %1109 = vmatpush1.bf16.msra.mxu0 %v789
    %1110 = vmatprep.mubr.bf16.mxu0 %v254
    %1111 = vmatmul.mubr.bf16.gmra.mrb[0].mxu0 %v253
    %v1112 = vpop.f32.mrb[0].mxu0
    %v1113 = vadd.f32 %v1060, %v1112
    %v1114 = vpop.f32.mrb[0].mxu0
    %v1115 = vadd.f32 %v1062, %v1114
    %v1116 = vpop.f32.mrb[0].mxu0
    %v1117 = vadd.f32 %v1064, %v1116
    %v1118 = vpop.f32.mrb[0].mxu0
    %v1119 = vadd.f32 %v1066, %v1118
    %1120 = vmatprep.mubr.bf16.mxu0 %v262
    %1121 = vmatmul.mubr.bf16.gmra.mrb[0].mxu0 %v261
    %v1122 = vpop.f32.mrb[0].mxu0
    %v1123 = vadd.f32 %v1070, %v1122
    %v1124 = vpop.f32.mrb[0].mxu0
    %v1125 = vadd.f32 %v1072, %v1124
    %v1126 = vpop.f32.mrb[0].mxu0
    %v1127 = vadd.f32 %v1074, %v1126
    %v1128 = vpop.f32.mrb[0].mxu0
    %v1129 = vadd.f32 %v1076, %v1128
    %1130 = vdwg.mxu0
    %v1131 = vmax.f32 %v1113, 0.0
    %v1132 = vmax.f32 %v1115, 0.0
    %v1133 = vmax.f32 %v1117, 0.0
    %v1134 = vmax.f32 %v1119, 0.0
    %v1135 = vmax.f32 %v1123, 0.0
    %v1136 = vmax.f32 %v1125, 0.0
    %v1137 = vmax.f32 %v1127, 0.0
    %v1138 = vmax.f32 %v1129, 0.0
    %v1139 = vpack.c.bf16 %v1133, %v1131
    %v1140 = vpack.c.bf16 %v1134, %v1132
    %v1141 = vpack.c.bf16 %v1137, %v1135
    %v1142 = vpack.c.bf16 %v1138, %v1136
    %v1147 = vunpack.c.l.b16 %v1139
    %v1148 = vunpack.c.l.b16 %v1140
    %v1149 = vunpack.c.h.b16 %v1139
    %v1150 = vunpack.c.h.b16 %v1140
    %v1151 = vunpack.c.l.b16 %v1141
    %v1152 = vunpack.c.l.b16 %v1142
    %v1153 = vunpack.c.h.b16 %v1141
    %v1154 = vunpack.c.h.b16 %v1142
    %v1155 = vpack.c.b16 %v1148, %v1147
    %v1156 = vpack.c.b16 %v1150, %v1149
    %v1157 = vpack.c.b16 %v1152, %v1151
    %v1158 = vpack.c.b16 %v1154, %v1153
    %1163 = vst [vmem:[#allocation7] sm:$0xff] %v1155
    %1164 = vst [vmem:[#allocation7 + $0x8] sm:$0xff] %v1156
    %1165 = vst [vmem:[#allocation7 + $0x10] sm:$0xff] %v1157
    %1166 = vst [vmem:[#allocation7 + $0x18] sm:$0xff] %v1158
    // Predicated region
    $region22: #{tpu_custom_call.1} parent=1 // pred_check
      _
    $region23: #{tpu_custom_call.1} parent=1 // pred_check_branch
      %1168 = sbr.rel (0) target = $region25
    $region24: #{tpu_custom_call.1} parent=1 // pred_region
      %s1170 = ssub.s32 512, 512
      %1171 = vsyncadd [#allocation4], %s1170
      %s1172 = sshll.u32 [#allocation7], 4
      %s1173 = int_to_ptr.vmem [resolvable:$true] %s1172
      %1178 = dma.vmem_to_hbm [thread:$0]  %s1173, 512, %s3, [#allocation4], 128, 128, 8
    $region25: #{tpu_custom_call.1} parent=1 // pred_fallthru
      _
    // Predicated region
    $region26: #{tpu_custom_call.1} parent=1 // pred_check
      _
    $region27: #{tpu_custom_call.1} parent=1 // pred_check_branch
      %1180 = sbr.rel (0) target = $region29
    $region28: #{tpu_custom_call.1} parent=1 // pred_region
      %1181 = dma.done [#allocation4], 512
    $region29: #{tpu_custom_call.1} parent=1 // pred_fallthru
      _
    %1182 = vsyncpa [#allocation3], 1
    %1183 = vsyncpa [#allocation6], 1
    %1184 = vsyncpa [#allocation4], 1

</llo_original>
